<compile_context>
chip_gen: v5e
topology: v5e:2x2
jax: 0.10.0
libtpu: 0.0.40
codegen_flags: <defaults>
</compile_context>

<pallas_src>
import functools

import jax
import jax.numpy as jnp
from jax import lax
from jax.experimental import pallas as pl
from jax.experimental.pallas import tpu as pltpu

LEAKY_SLOPE = 0.2
BN_EPS = 1e-5                    # PyTorch BatchNorm2d default
K_ALIGN = 64                     # pad contraction dim (k*k*Cin) to this multiple
TILE_ROWS_MAX = 1024             # folded output rows per grid step (layer 1)
VMEM_LIMIT = 32 * 1024 * 1024    # safe on v5e/v6e/v7x (v7x: 64 MiB physical/TC)


def _round_up(x, m):
    return (x + m - 1) // m * m


# ------------------------------- kernels ----------------------------------


def _matmul_act_kernel(x_ref, w_ref, o_ref):
    """Conv-as-matmul (bf16 in, f32 acc) + LeakyReLU; lane-dense bf16 store."""
    y = jnp.dot(x_ref[...], w_ref[...], preferred_element_type=jnp.float32)
    y = jnp.where(y > 0, y, LEAKY_SLOPE * y)
    o_ref[...] = y.astype(o_ref.dtype)


def _make_conv_bn_act_kernel(m_true, fold):
    """Fused conv matmul + global BN (biased batch stats) + LeakyReLU.

    `fold == 2` means channels are folded two-per-128-lane slab (cout=64):
    per-channel sums are recovered with a single 64-lane rotation (XLU slot),
    so mean/var stay exact.
    """
    inv_m = 1.0 / float(m_true)

    def kernel(cols_ref, w_ref, gb_ref, o_ref):
        acc = jnp.dot(cols_ref[...], w_ref[...],
                      preferred_element_type=jnp.float32)      # (R, Cf) f32
        s = jnp.sum(acc, axis=0, keepdims=True)                # (1, Cf)
        ss = jnp.sum(acc * acc, axis=0, keepdims=True)         # (1, Cf)
        if fold == 2:
            half = acc.shape[1] // 2
            s = s + pltpu.roll(s, shift=half, axis=1)
            ss = ss + pltpu.roll(ss, shift=half, axis=1)
        mean = s * inv_m
        # TODO(synk): switch to centered (Welford-style) partial sums if the
        # batch grows enough for E[x^2]-E[x]^2 cancellation to matter.
        var = jnp.maximum(ss * inv_m - mean * mean, 0.0)
        gb = gb_ref[...]                                        # (2, Cf) f32
        scale = gb[0:1, :] * lax.rsqrt(var + BN_EPS)
        shift = gb[1:2, :] - mean * scale
        y = acc * scale + shift
        y = jnp.where(y > 0, y, LEAKY_SLOPE * y)
        o_ref[...] = y.astype(o_ref.dtype)

    return kernel


def _make_conv_bn_act_head_kernel(m_true):
    """Layer-4 fusion: conv matmul + BN + LeakyReLU + final per-sample dot.

    The final Conv2d(256,1,4,1,0) over a 4x4 map is a per-sample dot product;
    it is computed on the in-register f32 activation (y * wf, then an (N, M)
    selection matmul + lane reduce), so the layer-4 activation never hits HBM.
    """
    inv_m = 1.0 / float(m_true)

    def kernel(cols_ref, w_ref, gb_ref, wf_ref, sel_ref, o_ref):
        acc = jnp.dot(cols_ref[...], w_ref[...],
                      preferred_element_type=jnp.float32)      # (M, C) f32
        s = jnp.sum(acc, axis=0, keepdims=True)
        ss = jnp.sum(acc * acc, axis=0, keepdims=True)
        mean = s * inv_m
        var = jnp.maximum(ss * inv_m - mean * mean, 0.0)
        gb = gb_ref[...]
        scale = gb[0:1, :] * lax.rsqrt(var + BN_EPS)
        shift = gb[1:2, :] - mean * scale
        y = acc * scale + shift
        y = jnp.where(y > 0, y, LEAKY_SLOPE * y)               # (M, C) f32
        z = y * wf_ref[...]                                    # final-conv taps
        t = jnp.dot(sel_ref[...], z, preferred_element_type=jnp.float32)  # (N, C)
        o_ref[...] = jnp.sum(t, axis=1, keepdims=True)         # (N, 1) logits

    return kernel


# --------------------------- wrapper helpers -------------------------------


def _im2col_bf16(x, k, stride, pad):
    """x: (N,H,W,C) -> bf16 (N*Ho*Wo, k*k*C) im2col matrix, plus (Ho, Wo)."""
    # TODO(synk): the strided kxk window gather is not expressible as a
    # BlockSpec window; an in-kernel implicit-GEMM (strided DMA of the padded
    # NHWC input) would avoid materializing cols in HBM.  Kept as XLA glue.
    N, H, W, C = x.shape
    xp = jnp.pad(x, ((0, 0), (pad, pad), (pad, pad), (0, 0)))
    Ho = (H + 2 * pad - k) // stride + 1
    Wo = (W + 2 * pad - k) // stride + 1
    taps = []
    for kh in range(k):
        for kw in range(k):
            taps.append(xp[:, kh:kh + stride * Ho:stride,
                           kw:kw + stride * Wo:stride, :])
    cols = jnp.stack(taps, axis=3).reshape(N * Ho * Wo, k * k * C)
    return cols.astype(jnp.bfloat16), Ho, Wo


def _fold_factor(cout, m_rows):
    """Lane-folding factor so the matmul output is a dense-128-lane slab."""
    if cout < 128 and 128 % cout == 0 and m_rows % (128 // cout) == 0:
        return 128 // cout
    return 1


def _fold_operands(cols_bf16, w_mat_f32, fold):
    """Regroup `fold` consecutive output rows and block-diagonalize the weight.

    The (M/fold, fold*cout) matmul result then has exactly the same row-major
    memory layout as the (M, cout) NHWC activation, but every store is a full
    128-lane vst (no masked partial stores for cout=32/64).
    """
    M, K = cols_bf16.shape
    K_pad = _round_up(K, K_ALIGN)
    cols_p = jnp.pad(cols_bf16, ((0, 0), (0, K_pad - K)))
    w_p = jnp.pad(w_mat_f32, ((0, K_pad - K), (0, 0)))
    cols_f = cols_p.reshape(M // fold, fold * K_pad)
    if fold > 1:
        w_p = jnp.kron(jnp.eye(fold, dtype=w_p.dtype), w_p)   # block-diagonal
    return cols_f, w_p.astype(jnp.bfloat16)


# ----------------------------- layer wrappers ------------------------------


@functools.partial(jax.jit, static_argnames=("stride", "pad"))
def _conv_act_layer(x_nhwc, w_hwio, *, stride, pad):
    """Layer 1: Conv + LeakyReLU (no BN), gridded over folded output rows."""
    N = x_nhwc.shape[0]
    k, _, cin, cout = w_hwio.shape
    cols, Ho, Wo = _im2col_bf16(x_nhwc, k, stride, pad)
    M = cols.shape[0]
    fold = _fold_factor(cout, M)
    cols_f, w_f = _fold_operands(
        cols, w_hwio.reshape(k * k * cin, cout).astype(jnp.float32), fold)
    Mf, Kf = cols_f.shape
    Cf = fold * cout

    tile_r = min(TILE_ROWS_MAX, Mf)
    Mp = _round_up(Mf, tile_r)
    cols_f = jnp.pad(cols_f, ((0, Mp - Mf), (0, 0)))   # zero rows -> zero output

    out = pl.pallas_call(
        _matmul_act_kernel,
        grid=(Mp // tile_r,),
        in_specs=[pl.BlockSpec((tile_r, Kf), lambda i: (i, 0)),
                  pl.BlockSpec((Kf, Cf), lambda i: (0, 0))],   # resident weights
        out_specs=pl.BlockSpec((tile_r, Cf), lambda i: (i, 0)),
        out_shape=jax.ShapeDtypeStruct((Mp, Cf), jnp.bfloat16),
        compiler_params=pltpu.CompilerParams(
            dimension_semantics=("parallel",),   # shard M across v7x's 2 TCs
            vmem_limit_bytes=VMEM_LIMIT),
    )(cols_f, w_f)
    return out[:Mf].reshape(N, Ho, Wo, cout)


@functools.partial(jax.jit, static_argnames=("stride", "pad"))
def _conv_bn_act_layer(x_nhwc, w_hwio, gamma, beta, *, stride, pad):
    """Layers 2-3: ONE fused pallas_call (conv matmul + global BN + LeakyReLU)."""
    N = x_nhwc.shape[0]
    k, _, cin, cout = w_hwio.shape
    cols, Ho, Wo = _im2col_bf16(x_nhwc, k, stride, pad)
    M = cols.shape[0]
    fold = _fold_factor(cout, M)
    if fold > 2:            # BN stat recovery uses a single 64-lane roll
        fold = 1
    cols_f, w_f = _fold_operands(
        cols, w_hwio.reshape(k * k * cin, cout).astype(jnp.float32), fold)
    gb = jnp.stack([jnp.tile(gamma, fold),
                    jnp.tile(beta, fold)]).astype(jnp.float32)     # (2, Cf)

    # TODO(synk): for batches where cols_f exceeds one VMEM tile, add the
    # multi-tile variant that keeps y resident in VMEM scratch across grid steps.
    vmem = pl.BlockSpec(memory_space=pltpu.MemorySpace.VMEM)
    out = pl.pallas_call(
        _make_conv_bn_act_kernel(M, fold),
        in_specs=[vmem, vmem, vmem],
        out_specs=vmem,
        out_shape=jax.ShapeDtypeStruct((M // fold, fold * cout), jnp.bfloat16),
        compiler_params=pltpu.CompilerParams(vmem_limit_bytes=VMEM_LIMIT),
    )(cols_f, w_f, gb)
    return out.reshape(N, Ho, Wo, cout)


@functools.partial(jax.jit, static_argnames=("stride", "pad"))
def _conv_bn_act_head(x_nhwc, w_hwio, gamma, beta, w_final, *, stride, pad):
    """Layer 4 + final Conv2d(C,1,k,1,0): one fused pallas_call -> (N, 1) logits."""
    N = x_nhwc.shape[0]
    k, _, cin, cout = w_hwio.shape
    cols, Ho, Wo = _im2col_bf16(x_nhwc, k, stride, pad)
    M = cols.shape[0]
    kf = w_final.shape[0]
    assert (kf, kf) == (Ho, Wo), "final conv expects a kf x kf feature map"
    w_mat = w_hwio.reshape(k * k * cin, cout).astype(jnp.bfloat16)
    gb = jnp.stack([gamma, beta]).astype(jnp.float32)            # (2, C)
    # Per-row taps of the final conv weight (rows ordered (n, ho, wo) like y).
    wf = jnp.tile(w_final.reshape(Ho * Wo, cout).astype(jnp.float32), (N, 1))
    # (N, M) one-hot row->sample pooling matrix for the per-sample reduction.
    sel = jnp.repeat(jnp.eye(N, dtype=jnp.float32), Ho * Wo, axis=1)

    vmem = pl.BlockSpec(memory_space=pltpu.MemorySpace.VMEM)
    out = pl.pallas_call(
        _make_conv_bn_act_head_kernel(M),
        in_specs=[vmem] * 5,
        out_specs=vmem,
        out_shape=jax.ShapeDtypeStruct((N, 1), jnp.float32),
        compiler_params=pltpu.CompilerParams(vmem_limit_bytes=VMEM_LIMIT),
    )(cols, w_mat, gb, wf, sel)
    return out


# ------------------------------- forward -----------------------------------


def discriminator_forward(x_nchw, params):
    """Pallas implementation of Discriminator.forward (NCHW input, like PyTorch)."""
    x = jnp.transpose(x_nchw, (0, 2, 3, 1))                  # NCHW -> NHWC
    w0, _, _, s0, p0, _, _ = params[0]
    x = _conv_act_layer(x, w0, stride=s0, pad=p0)            # Conv + LeakyReLU
    for i in (1, 2):                                         # Conv + BN + LeakyReLU
        w, g, b, s, p, _, _ = params[i]
        x = _conv_bn_act_layer(x, w, g, b, stride=s, pad=p)
    w3, g3, b3, s3, p3, _, _ = params[3]
    w4 = params[4][0]
    out = _conv_bn_act_head(x, w3, g3, b3, w4, stride=s3, pad=p3)   # (N, 1)
    return jnp.squeeze(out)                                  # (N,)


def reference_forward(x_nchw, params):
    """Pure-JAX f32 reference (lax.conv) to validate the Pallas path."""
    x = jnp.transpose(x_nchw, (0, 2, 3, 1)).astype(jnp.float32)
    for (w, g, b, stride, pad, use_bn, use_act) in params:
        x = lax.conv_general_dilated(
            x, w, window_strides=(stride, stride),
            padding=[(pad, pad), (pad, pad)],
            dimension_numbers=("NHWC", "HWIO", "NHWC"),
            precision=lax.Precision.HIGHEST)
        if use_bn:
            mean = jnp.mean(x, axis=(0, 1, 2), keepdims=True)
            var = jnp.mean((x - mean) ** 2, axis=(0, 1, 2), keepdims=True)
            x = (x - mean) * lax.rsqrt(var + BN_EPS) * g + b
        if use_act:
            x = jnp.where(x > 0, x, LEAKY_SLOPE * x)
    return jnp.squeeze(x)


if __name__ == "__main__":
    key = jax.random.PRNGKey(0)
    k_in, *k_ws = jax.random.split(key, 6)

    # (Cin, Cout, stride, pad, use_bn, use_act) — mirrors the nn.Sequential.
    layer_cfg = [
        (3, 32, 2, 1, False, True),    # Conv2d(3,32,4,2,1)    + LeakyReLU
        (32, 64, 2, 1, True, True),    # Conv2d(32,64,4,2,1)   + BN + LeakyReLU
        (64, 128, 2, 1, True, True),   # Conv2d(64,128,4,2,1)  + BN + LeakyReLU
        (128, 256, 2, 1, True, True),  # Conv2d(128,256,4,2,1) + BN + LeakyReLU
        (256, 1, 1, 0, False, False),  # Conv2d(256,1,4,1,0)
    ]

    # Deterministic params: DCGAN-style N(0, 0.02) conv weights (HWIO, bias=False),
    # BatchNorm weight=1 / bias=0 (PyTorch defaults).
    params = []
    for kk, (cin, cout, stride, pad, use_bn, use_act) in zip(k_ws, layer_cfg):
        w = 0.02 * jax.random.normal(kk, (4, 4, cin, cout), jnp.float32)
        g = jnp.ones((cout,), jnp.float32)
        b = jnp.zeros((cout,), jnp.float32)
        params.append((w, g, b, stride, pad, use_bn, use_act))

    # The final 4x4 valid conv requires 64x64 input (64->32->16->8->4->1).
    x = jax.random.normal(k_in, (2, 3, 64, 64), jnp.float32)  # NCHW, like PyTorch

    out = discriminator_forward(x, params)
    out = jax.block_until_ready(out)

    ref = reference_forward(x, params)
    assert out.shape == (2,), f"unexpected output shape {out.shape}"
    assert jnp.allclose(out, ref, rtol=5e-2, atol=5e-2), (out, ref)

    print("KERNEL_OK")
</pallas_src>

<mosaic_0001>
module attributes {stable_mosaic.version = 11 : i64} {
  func.func @_matmul_act_kernel(%arg0: i32, %arg1: memref<512x256xbf16, #tpu.memory_space<vmem>>, %arg2: memref<256x128xbf16, #tpu.memory_space<vmem>>, %arg3: memref<512x128xbf16, #tpu.memory_space<vmem>>) attributes {dimension_semantics = [#tpu.dimension_semantics<parallel>], iteration_bounds = array<i64: 1>, scalar_prefetch = 0 : i64, scratch_operands = 0 : i64, tpu.core_type = #tpu.core_type<tc>, window_params = [{transform_indices = @transform_0, window_bounds = array<i64: 512, 256>}, {pipeline_mode = #tpu.pipeline_mode<synchronous>, transform_indices = @transform_1, window_bounds = array<i64: 256, 128>}, {transform_indices = @transform_2, window_bounds = array<i64: 512, 128>}]} {
    %c0 = arith.constant 0 : index
    %c0_0 = arith.constant 0 : index
    %0 = vector.load %arg1[%c0, %c0_0] : memref<512x256xbf16, #tpu.memory_space<vmem>>, vector<512x256xbf16>
    %c0_1 = arith.constant 0 : index
    %c0_2 = arith.constant 0 : index
    %1 = vector.load %arg2[%c0_1, %c0_2] : memref<256x128xbf16, #tpu.memory_space<vmem>>, vector<256x128xbf16>
    %cst = arith.constant dense<0.000000e+00> : vector<512x128xf32>
    %2 = tpu.matmul %0, %1, %cst {dimension_numbers = #tpu.dot_dimension_numbers<[1], [0], [0], [1], [0, 0, 1, 1], [], []>} : vector<512x256xbf16>, vector<256x128xbf16>, vector<512x128xf32> -> vector<512x128xf32>
    %cst_3 = arith.constant 0.000000e+00 : f32
    %3 = vector.broadcast %cst_3 : f32 to vector<512x128xf32>
    %4 = arith.cmpf ogt, %2, %3 : vector<512x128xf32>
    %cst_4 = arith.constant 2.000000e-01 : f32
    %5 = vector.broadcast %cst_4 : f32 to vector<512x128xf32>
    %6 = arith.mulf %5, %2 : vector<512x128xf32>
    %7 = arith.select %4, %2, %6 : vector<512x128xi1>, vector<512x128xf32>
    %8 = arith.truncf %7 : vector<512x128xf32> to vector<512x128xbf16>
    %c0_5 = arith.constant 0 : index
    %c0_6 = arith.constant 0 : index
    %9 = vector.load %arg3[%c0_5, %c0_6] : memref<512x128xbf16, #tpu.memory_space<vmem>>, vector<512x128xbf16>
    tpu.vector_store %arg3[%c0_5, %c0_6], %8 {strides = array<i32>} : memref<512x128xbf16, #tpu.memory_space<vmem>>, vector<512x128xbf16>,
    return
  }
  func.func @transform_0(%arg0: i32) -> (i32, i32) {
    %c0_i32 = arith.constant 0 : i32
    %c0_i32_0 = arith.constant 0 : i32
    return %arg0, %c0_i32 : i32, i32
  }
  func.func @transform_1(%arg0: i32) -> (i32, i32) {
    %c0_i32 = arith.constant 0 : i32
    %c0_i32_0 = arith.constant 0 : i32
    %c0_i32_1 = arith.constant 0 : i32
    return %c0_i32, %c0_i32_0 : i32, i32
  }
  func.func @transform_2(%arg0: i32) -> (i32, i32) {
    %c0_i32 = arith.constant 0 : i32
    %c0_i32_0 = arith.constant 0 : i32
    return %arg0, %c0_i32 : i32, i32
  }
}

</mosaic_0001>

<llo_original>
// kernel: _conv_act_layer.1
$region0: #{_conv_act_layer.1}
  #allocation0 [shape = 'u32[]', space=smem, size = 0x4, offset = 0x4, fixed_abs, tag = 'smem constant byte address 0x4 - core index']
  #allocation1 [shape = 'u32[72,128]{1,0:T(1,128)}', space=vmem, size = 0x9000, scoped, tag = 'internal scratch']
  %s0 = inlined_call_operand.vmem [shape: bf16[512,256], index: 0, kind: input, shape index: {}]
  %s1 = inlined_call_operand.vmem [shape: bf16[256,128], index: 1, kind: input, shape index: {}]
  %s2 = inlined_call_operand.vmem [shape: bf16[512,128], index: 2, kind: output, shape index: {}]
  %s3 = sld [smem:[#allocation0]]
  $region18: #{_conv_act_layer.1} parent=0
    _
  %s5 = ssub.s32 1, %s3
  %s6 = scalar_select 0, %s5, %s3
  // Predicated region
  $region2: #{_conv_act_layer.1} parent=0 // pred_check
    _
  $region3: #{_conv_act_layer.1} parent=0 // pred_check_branch
    %8 = sbr.rel (0) target = $region5
  $region4: #{_conv_act_layer.1} parent=0 // pred_region
    _
  $region5: #{_conv_act_layer.1} parent=0 // pred_fallthru
    _
  // Predicated region
  $region6: #{_conv_act_layer.1} parent=0 // pred_check
    _
  $region7: #{_conv_act_layer.1} parent=0 // pred_check_branch
    %10 = sbr.rel (0) target = $region9
  $region8: #{_conv_act_layer.1} parent=0 // pred_region
    _
  $region9: #{_conv_act_layer.1} parent=0 // pred_fallthru
    _
  %v11 = vld [vmem:[%s0] sm:$0xff]
  %v12 = vld [vmem:[%s0 + $0x8] sm:$0xff]
  %v13 = vld [vmem:[%s0 + $0x10] sm:$0xff]
  %v14 = vld [vmem:[%s0 + $0x18] sm:$0xff]
  %v15 = vld [vmem:[%s0 + $0x20] sm:$0xff]
  %v16 = vld [vmem:[%s0 + $0x28] sm:$0xff]
  %v17 = vld [vmem:[%s0 + $0x30] sm:$0xff]
  %v18 = vld [vmem:[%s0 + $0x38] sm:$0xff]
  %v19 = vld [vmem:[%s0 + $0x40] sm:$0xff]
  %v20 = vld [vmem:[%s0 + $0x48] sm:$0xff]
  %v21 = vld [vmem:[%s0 + $0x50] sm:$0xff]
  %v22 = vld [vmem:[%s0 + $0x58] sm:$0xff]
  %v23 = vld [vmem:[%s0 + $0x60] sm:$0xff]
  %v24 = vld [vmem:[%s0 + $0x68] sm:$0xff]
  %v25 = vld [vmem:[%s0 + $0x70] sm:$0xff]
  %v26 = vld [vmem:[%s0 + $0x78] sm:$0xff]
  %v27 = vld [vmem:[%s0 + $0x80] sm:$0xff]
  %v28 = vld [vmem:[%s0 + $0x88] sm:$0xff]
  %v29 = vld [vmem:[%s0 + $0x90] sm:$0xff]
  %v30 = vld [vmem:[%s0 + $0x98] sm:$0xff]
  %v31 = vld [vmem:[%s0 + $0xa0] sm:$0xff]
  %v32 = vld [vmem:[%s0 + $0xa8] sm:$0xff]
  %v33 = vld [vmem:[%s0 + $0xb0] sm:$0xff]
  %v34 = vld [vmem:[%s0 + $0xb8] sm:$0xff]
  %v35 = vld [vmem:[%s0 + $0xc0] sm:$0xff]
  %v36 = vld [vmem:[%s0 + $0xc8] sm:$0xff]
  %v37 = vld [vmem:[%s0 + $0xd0] sm:$0xff]
  %v38 = vld [vmem:[%s0 + $0xd8] sm:$0xff]
  %v39 = vld [vmem:[%s0 + $0xe0] sm:$0xff]
  %v40 = vld [vmem:[%s0 + $0xe8] sm:$0xff]
  %v41 = vld [vmem:[%s0 + $0xf0] sm:$0xff]
  %v42 = vld [vmem:[%s0 + $0xf8] sm:$0xff]
  %v43 = vld [vmem:[%s0 + $0x100] sm:$0xff]
  %v44 = vld [vmem:[%s0 + $0x108] sm:$0xff]
  %v45 = vld [vmem:[%s0 + $0x110] sm:$0xff]
  %v46 = vld [vmem:[%s0 + $0x118] sm:$0xff]
  %v47 = vld [vmem:[%s0 + $0x120] sm:$0xff]
  %v48 = vld [vmem:[%s0 + $0x128] sm:$0xff]
  %v49 = vld [vmem:[%s0 + $0x130] sm:$0xff]
  %v50 = vld [vmem:[%s0 + $0x138] sm:$0xff]
  %v51 = vld [vmem:[%s0 + $0x140] sm:$0xff]
  %v52 = vld [vmem:[%s0 + $0x148] sm:$0xff]
  %v53 = vld [vmem:[%s0 + $0x150] sm:$0xff]
  %v54 = vld [vmem:[%s0 + $0x158] sm:$0xff]
  %v55 = vld [vmem:[%s0 + $0x160] sm:$0xff]
  %v56 = vld [vmem:[%s0 + $0x168] sm:$0xff]
  %v57 = vld [vmem:[%s0 + $0x170] sm:$0xff]
  %v58 = vld [vmem:[%s0 + $0x178] sm:$0xff]
  %v59 = vld [vmem:[%s0 + $0x180] sm:$0xff]
  %v60 = vld [vmem:[%s0 + $0x188] sm:$0xff]
  %v61 = vld [vmem:[%s0 + $0x190] sm:$0xff]
  %v62 = vld [vmem:[%s0 + $0x198] sm:$0xff]
  %v63 = vld [vmem:[%s0 + $0x1a0] sm:$0xff]
  %v64 = vld [vmem:[%s0 + $0x1a8] sm:$0xff]
  %v65 = vld [vmem:[%s0 + $0x1b0] sm:$0xff]
  %v66 = vld [vmem:[%s0 + $0x1b8] sm:$0xff]
  %v67 = vld [vmem:[%s0 + $0x1c0] sm:$0xff]
  %v68 = vld [vmem:[%s0 + $0x1c8] sm:$0xff]
  %v69 = vld [vmem:[%s0 + $0x1d0] sm:$0xff]
  %v70 = vld [vmem:[%s0 + $0x1d8] sm:$0xff]
  %v71 = vld [vmem:[%s0 + $0x1e0] sm:$0xff]
  %v72 = vld [vmem:[%s0 + $0x1e8] sm:$0xff]
  %v73 = vld [vmem:[%s0 + $0x1f0] sm:$0xff]
  %v74 = vld [vmem:[%s0 + $0x1f8] sm:$0xff]
  %v75 = vld [vmem:[%s1] sm:$0xf]
  %v76 = vld [vmem:[%s1 + $0x4] sm:$0xf]
  %v77 = vld [vmem:[%s1 + $0x8] sm:$0xf]
  %v78 = vld [vmem:[%s1 + $0xc] sm:$0xf]
  %v79 = vld [vmem:[%s1 + $0x10] sm:$0xf]
  %v80 = vld [vmem:[%s1 + $0x14] sm:$0xf]
  %v81 = vld [vmem:[%s1 + $0x18] sm:$0xf]
  %v82 = vld [vmem:[%s1 + $0x1c] sm:$0xf]
  %v83 = vld [vmem:[%s1 + $0x20] sm:$0xf]
  %v84 = vld [vmem:[%s1 + $0x24] sm:$0xf]
  %v85 = vld [vmem:[%s1 + $0x28] sm:$0xf]
  %v86 = vld [vmem:[%s1 + $0x2c] sm:$0xf]
  %v87 = vld [vmem:[%s1 + $0x30] sm:$0xf]
  %v88 = vld [vmem:[%s1 + $0x34] sm:$0xf]
  %v89 = vld [vmem:[%s1 + $0x38] sm:$0xf]
  %v90 = vld [vmem:[%s1 + $0x3c] sm:$0xf]
  %v91 = vld [vmem:[%s1 + $0x40] sm:$0xf]
  %v92 = vld [vmem:[%s1 + $0x44] sm:$0xf]
  %v93 = vld [vmem:[%s1 + $0x48] sm:$0xf]
  %v94 = vld [vmem:[%s1 + $0x4c] sm:$0xf]
  %v95 = vld [vmem:[%s1 + $0x50] sm:$0xf]
  %v96 = vld [vmem:[%s1 + $0x54] sm:$0xf]
  %v97 = vld [vmem:[%s1 + $0x58] sm:$0xf]
  %v98 = vld [vmem:[%s1 + $0x5c] sm:$0xf]
  %v99 = vld [vmem:[%s1 + $0x60] sm:$0xf]
  %v100 = vld [vmem:[%s1 + $0x64] sm:$0xf]
  %v101 = vld [vmem:[%s1 + $0x68] sm:$0xf]
  %v102 = vld [vmem:[%s1 + $0x6c] sm:$0xf]
  %v103 = vld [vmem:[%s1 + $0x70] sm:$0xf]
  %v104 = vld [vmem:[%s1 + $0x74] sm:$0xf]
  %v105 = vld [vmem:[%s1 + $0x78] sm:$0xf]
  %v106 = vld [vmem:[%s1 + $0x7c] sm:$0xf]
  %v171 = vunpack.c.l.b16 %v11
  %v172 = vunpack.c.h.b16 %v11
  %v173 = vunpack.c.l.b16 %v12
  %v174 = vunpack.c.h.b16 %v12
  %v175 = vunpack.c.l.b16 %v13
  %v176 = vunpack.c.h.b16 %v13
  %v177 = vunpack.c.l.b16 %v14
  %v178 = vunpack.c.h.b16 %v14
  %v179 = vunpack.c.l.b16 %v15
  %v180 = vunpack.c.h.b16 %v15
  %v181 = vunpack.c.l.b16 %v16
  %v182 = vunpack.c.h.b16 %v16
  %v183 = vunpack.c.l.b16 %v17
  %v184 = vunpack.c.h.b16 %v17
  %v185 = vunpack.c.l.b16 %v18
  %v186 = vunpack.c.h.b16 %v18
  %v187 = vunpack.c.l.b16 %v19
  %v188 = vunpack.c.h.b16 %v19
  %v189 = vunpack.c.l.b16 %v20
  %v190 = vunpack.c.h.b16 %v20
  %v191 = vunpack.c.l.b16 %v21
  %v192 = vunpack.c.h.b16 %v21
  %v193 = vunpack.c.l.b16 %v22
  %v194 = vunpack.c.h.b16 %v22
  %v195 = vunpack.c.l.b16 %v23
  %v196 = vunpack.c.h.b16 %v23
  %v197 = vunpack.c.l.b16 %v24
  %v198 = vunpack.c.h.b16 %v24
  %v199 = vunpack.c.l.b16 %v25
  %v200 = vunpack.c.h.b16 %v25
  %v201 = vunpack.c.l.b16 %v26
  %v202 = vunpack.c.h.b16 %v26
  %v203 = vunpack.c.l.b16 %v27
  %v204 = vunpack.c.h.b16 %v27
  %v205 = vunpack.c.l.b16 %v28
  %v206 = vunpack.c.h.b16 %v28
  %v207 = vunpack.c.l.b16 %v29
  %v208 = vunpack.c.h.b16 %v29
  %v209 = vunpack.c.l.b16 %v30
  %v210 = vunpack.c.h.b16 %v30
  %v211 = vunpack.c.l.b16 %v31
  %v212 = vunpack.c.h.b16 %v31
  %v213 = vunpack.c.l.b16 %v32
  %v214 = vunpack.c.h.b16 %v32
  %v215 = vunpack.c.l.b16 %v33
  %v216 = vunpack.c.h.b16 %v33
  %v217 = vunpack.c.l.b16 %v34
  %v218 = vunpack.c.h.b16 %v34
  %v219 = vunpack.c.l.b16 %v35
  %v220 = vunpack.c.h.b16 %v35
  %v221 = vunpack.c.l.b16 %v36
  %v222 = vunpack.c.h.b16 %v36
  %v223 = vunpack.c.l.b16 %v37
  %v224 = vunpack.c.h.b16 %v37
  %v225 = vunpack.c.l.b16 %v38
  %v226 = vunpack.c.h.b16 %v38
  %v227 = vunpack.c.l.b16 %v39
  %v228 = vunpack.c.h.b16 %v39
  %v229 = vunpack.c.l.b16 %v40
  %v230 = vunpack.c.h.b16 %v40
  %v231 = vunpack.c.l.b16 %v41
  %v232 = vunpack.c.h.b16 %v41
  %v233 = vunpack.c.l.b16 %v42
  %v234 = vunpack.c.h.b16 %v42
  %v235 = vunpack.c.l.b16 %v43
  %v236 = vunpack.c.h.b16 %v43
  %v237 = vunpack.c.l.b16 %v44
  %v238 = vunpack.c.h.b16 %v44
  %v239 = vunpack.c.l.b16 %v45
  %v240 = vunpack.c.h.b16 %v45
  %v241 = vunpack.c.l.b16 %v46
  %v242 = vunpack.c.h.b16 %v46
  %v243 = vunpack.c.l.b16 %v47
  %v244 = vunpack.c.h.b16 %v47
  %v245 = vunpack.c.l.b16 %v48
  %v246 = vunpack.c.h.b16 %v48
  %v247 = vunpack.c.l.b16 %v49
  %v248 = vunpack.c.h.b16 %v49
  %v249 = vunpack.c.l.b16 %v50
  %v250 = vunpack.c.h.b16 %v50
  %v251 = vunpack.c.l.b16 %v51
  %v252 = vunpack.c.h.b16 %v51
  %v253 = vunpack.c.l.b16 %v52
  %v254 = vunpack.c.h.b16 %v52
  %v255 = vunpack.c.l.b16 %v53
  %v256 = vunpack.c.h.b16 %v53
  %v257 = vunpack.c.l.b16 %v54
  %v258 = vunpack.c.h.b16 %v54
  %v259 = vunpack.c.l.b16 %v55
  %v260 = vunpack.c.h.b16 %v55
  %v261 = vunpack.c.l.b16 %v56
  %v262 = vunpack.c.h.b16 %v56
  %v263 = vunpack.c.l.b16 %v57
  %v264 = vunpack.c.h.b16 %v57
  %v265 = vunpack.c.l.b16 %v58
  %v266 = vunpack.c.h.b16 %v58
  %v267 = vunpack.c.l.b16 %v59
  %v268 = vunpack.c.h.b16 %v59
  %v269 = vunpack.c.l.b16 %v60
  %v270 = vunpack.c.h.b16 %v60
  %v271 = vunpack.c.l.b16 %v61
  %v272 = vunpack.c.h.b16 %v61
  %v273 = vunpack.c.l.b16 %v62
  %v274 = vunpack.c.h.b16 %v62
  %v275 = vunpack.c.l.b16 %v63
  %v276 = vunpack.c.h.b16 %v63
  %v277 = vunpack.c.l.b16 %v64
  %v278 = vunpack.c.h.b16 %v64
  %v279 = vunpack.c.l.b16 %v65
  %v280 = vunpack.c.h.b16 %v65
  %v281 = vunpack.c.l.b16 %v66
  %v282 = vunpack.c.h.b16 %v66
  %v283 = vunpack.c.l.b16 %v67
  %v284 = vunpack.c.h.b16 %v67
  %v285 = vunpack.c.l.b16 %v68
  %v286 = vunpack.c.h.b16 %v68
  %v287 = vunpack.c.l.b16 %v69
  %v288 = vunpack.c.h.b16 %v69
  %v289 = vunpack.c.l.b16 %v70
  %v290 = vunpack.c.h.b16 %v70
  %v291 = vunpack.c.l.b16 %v71
  %v292 = vunpack.c.h.b16 %v71
  %v293 = vunpack.c.l.b16 %v72
  %v294 = vunpack.c.h.b16 %v72
  %v295 = vunpack.c.l.b16 %v73
  %v296 = vunpack.c.h.b16 %v73
  %v297 = vunpack.c.l.b16 %v74
  %v298 = vunpack.c.h.b16 %v74
  %v299 = vpack.c.b16 %v173, %v171
  %v300 = vpack.c.b16 %v174, %v172
  %v301 = vpack.c.b16 %v177, %v175
  %v302 = vpack.c.b16 %v178, %v176
  %v303 = vpack.c.b16 %v181, %v179
  %v304 = vpack.c.b16 %v182, %v180
  %v305 = vpack.c.b16 %v185, %v183
  %v306 = vpack.c.b16 %v186, %v184
  %v307 = vpack.c.b16 %v189, %v187
  %v308 = vpack.c.b16 %v190, %v188
  %v309 = vpack.c.b16 %v193, %v191
  %v310 = vpack.c.b16 %v194, %v192
  %v311 = vpack.c.b16 %v197, %v195
  %v312 = vpack.c.b16 %v198, %v196
  %v313 = vpack.c.b16 %v201, %v199
  %v314 = vpack.c.b16 %v202, %v200
  %v315 = vpack.c.b16 %v205, %v203
  %v316 = vpack.c.b16 %v206, %v204
  %v317 = vpack.c.b16 %v209, %v207
  %v318 = vpack.c.b16 %v210, %v208
  %v319 = vpack.c.b16 %v213, %v211
  %v320 = vpack.c.b16 %v214, %v212
  %v321 = vpack.c.b16 %v217, %v215
  %v322 = vpack.c.b16 %v218, %v216
  %v323 = vpack.c.b16 %v221, %v219
  %v324 = vpack.c.b16 %v222, %v220
  %v325 = vpack.c.b16 %v225, %v223
  %v326 = vpack.c.b16 %v226, %v224
  %v327 = vpack.c.b16 %v229, %v227
  %v328 = vpack.c.b16 %v230, %v228
  %v329 = vpack.c.b16 %v233, %v231
  %v330 = vpack.c.b16 %v234, %v232
  %v331 = vpack.c.b16 %v237, %v235
  %v332 = vpack.c.b16 %v238, %v236
  %v333 = vpack.c.b16 %v241, %v239
  %v334 = vpack.c.b16 %v242, %v240
  %v335 = vpack.c.b16 %v245, %v243
  %v336 = vpack.c.b16 %v246, %v244
  %v337 = vpack.c.b16 %v249, %v247
  %v338 = vpack.c.b16 %v250, %v248
  %v339 = vpack.c.b16 %v253, %v251
  %v340 = vpack.c.b16 %v254, %v252
  %v341 = vpack.c.b16 %v257, %v255
  %v342 = vpack.c.b16 %v258, %v256
  %v343 = vpack.c.b16 %v261, %v259
  %v344 = vpack.c.b16 %v262, %v260
  %v345 = vpack.c.b16 %v265, %v263
  %v346 = vpack.c.b16 %v266, %v264
  %v347 = vpack.c.b16 %v269, %v267
  %v348 = vpack.c.b16 %v270, %v268
  %v349 = vpack.c.b16 %v273, %v271
  %v350 = vpack.c.b16 %v274, %v272
  %v351 = vpack.c.b16 %v277, %v275
  %v352 = vpack.c.b16 %v278, %v276
  %v353 = vpack.c.b16 %v281, %v279
  %v354 = vpack.c.b16 %v282, %v280
  %v355 = vpack.c.b16 %v285, %v283
  %v356 = vpack.c.b16 %v286, %v284
  %v357 = vpack.c.b16 %v289, %v287
  %v358 = vpack.c.b16 %v290, %v288
  %v359 = vpack.c.b16 %v293, %v291
  %v360 = vpack.c.b16 %v294, %v292
  %v361 = vpack.c.b16 %v297, %v295
  %v362 = vpack.c.b16 %v298, %v296
  %v459 = vunpack.c.l.b16 %v75
  %v460 = vunpack.c.l.b16 %v76
  %v461 = vunpack.c.l.b16 %v77
  %v462 = vunpack.c.l.b16 %v78
  %v463 = vunpack.c.l.b16 %v79
  %v464 = vunpack.c.l.b16 %v80
  %v465 = vunpack.c.l.b16 %v81
  %v466 = vunpack.c.l.b16 %v82
  %v467 = vunpack.c.l.b16 %v83
  %v468 = vunpack.c.l.b16 %v84
  %v469 = vunpack.c.l.b16 %v85
  %v470 = vunpack.c.l.b16 %v86
  %v471 = vunpack.c.l.b16 %v87
  %v472 = vunpack.c.l.b16 %v88
  %v473 = vunpack.c.l.b16 %v89
  %v474 = vunpack.c.l.b16 %v90
  %v475 = vunpack.c.l.b16 %v91
  %v476 = vunpack.c.l.b16 %v92
  %v477 = vunpack.c.l.b16 %v93
  %v478 = vunpack.c.l.b16 %v94
  %v479 = vunpack.c.l.b16 %v95
  %v480 = vunpack.c.l.b16 %v96
  %v481 = vunpack.c.l.b16 %v97
  %v482 = vunpack.c.l.b16 %v98
  %v483 = vunpack.c.l.b16 %v99
  %v484 = vunpack.c.l.b16 %v100
  %v485 = vunpack.c.l.b16 %v101
  %v486 = vunpack.c.l.b16 %v102
  %v487 = vunpack.c.l.b16 %v103
  %v488 = vunpack.c.l.b16 %v104
  %v489 = vunpack.c.l.b16 %v105
  %v490 = vunpack.c.l.b16 %v106
  %v491 = vpack.c.b16 %v460, %v459
  %v492 = vpack.c.b16 %v462, %v461
  %v493 = vpack.c.b16 %v464, %v463
  %v494 = vpack.c.b16 %v466, %v465
  %v495 = vpack.c.b16 %v468, %v467
  %v496 = vpack.c.b16 %v470, %v469
  %v497 = vpack.c.b16 %v472, %v471
  %v498 = vpack.c.b16 %v474, %v473
  %v499 = vpack.c.b16 %v476, %v475
  %v500 = vpack.c.b16 %v478, %v477
  %v501 = vpack.c.b16 %v480, %v479
  %v502 = vpack.c.b16 %v482, %v481
  %v503 = vpack.c.b16 %v484, %v483
  %v504 = vpack.c.b16 %v486, %v485
  %v505 = vpack.c.b16 %v488, %v487
  %v506 = vpack.c.b16 %v490, %v489
  %523 = vmatpush.bf16.msra.mxu0 %v498
  %524 = vmatpush.bf16.msra.mxu0 %v497
  %525 = vmatpush.bf16.msra.mxu0 %v496
  %526 = vmatpush.bf16.msra.mxu0 %v495
  %527 = vmatpush.bf16.msra.mxu0 %v494
  %528 = vmatpush.bf16.msra.mxu0 %v493
  %529 = vmatpush.bf16.msra.mxu0 %v492
  %530 = vmatpush.bf16.msra.mxu0 %v491
  %531 = vmatmul.bf16.gmra.mxu0 %v299
  %v532 = vpop.f32.mrf.mxu0
  %v533 = vadd.f32 0.0, %v532
  %v534 = vpop.f32.mrf.mxu0
  %v535 = vadd.f32 0.0, %v534
  %536 = vmatmul.bf16.gmra.mxu0 %v301
  %v537 = vpop.f32.mrf.mxu0
  %v538 = vadd.f32 0.0, %v537
  %v539 = vpop.f32.mrf.mxu0
  %v540 = vadd.f32 0.0, %v539
  %541 = vmatmul.bf16.gmra.mxu0 %v303
  %v542 = vpop.f32.mrf.mxu0
  %v543 = vadd.f32 0.0, %v542
  %v544 = vpop.f32.mrf.mxu0
  %v545 = vadd.f32 0.0, %v544
  %546 = vmatmul.bf16.gmra.mxu0 %v305
  %v547 = vpop.f32.mrf.mxu0
  %v548 = vadd.f32 0.0, %v547
  %v549 = vpop.f32.mrf.mxu0
  %v550 = vadd.f32 0.0, %v549
  %551 = vmatmul.bf16.gmra.mxu0 %v307
  %v552 = vpop.f32.mrf.mxu0
  %v553 = vadd.f32 0.0, %v552
  %v554 = vpop.f32.mrf.mxu0
  %v555 = vadd.f32 0.0, %v554
  %556 = vmatmul.bf16.gmra.mxu0 %v309
  %v557 = vpop.f32.mrf.mxu0
  %v558 = vadd.f32 0.0, %v557
  %v559 = vpop.f32.mrf.mxu0
  %v560 = vadd.f32 0.0, %v559
  %561 = vmatmul.bf16.gmra.mxu0 %v311
  %v562 = vpop.f32.mrf.mxu0
  %v563 = vadd.f32 0.0, %v562
  %v564 = vpop.f32.mrf.mxu0
  %v565 = vadd.f32 0.0, %v564
  %566 = vmatmul.bf16.gmra.mxu0 %v313
  %v567 = vpop.f32.mrf.mxu0
  %v568 = vadd.f32 0.0, %v567
  %v569 = vpop.f32.mrf.mxu0
  %v570 = vadd.f32 0.0, %v569
  %571 = vmatmul.bf16.gmra.mxu0 %v315
  %v572 = vpop.f32.mrf.mxu0
  %v573 = vadd.f32 0.0, %v572
  %v574 = vpop.f32.mrf.mxu0
  %v575 = vadd.f32 0.0, %v574
  %576 = vmatmul.bf16.gmra.mxu0 %v317
  %v577 = vpop.f32.mrf.mxu0
  %v578 = vadd.f32 0.0, %v577
  %v579 = vpop.f32.mrf.mxu0
  %v580 = vadd.f32 0.0, %v579
  %581 = vmatmul.bf16.gmra.mxu0 %v319
  %v582 = vpop.f32.mrf.mxu0
  %v583 = vadd.f32 0.0, %v582
  %v584 = vpop.f32.mrf.mxu0
  %v585 = vadd.f32 0.0, %v584
  %586 = vmatmul.bf16.gmra.mxu0 %v321
  %v587 = vpop.f32.mrf.mxu0
  %v588 = vadd.f32 0.0, %v587
  %v589 = vpop.f32.mrf.mxu0
  %v590 = vadd.f32 0.0, %v589
  %591 = vmatmul.bf16.gmra.mxu0 %v323
  %v592 = vpop.f32.mrf.mxu0
  %v593 = vadd.f32 0.0, %v592
  %v594 = vpop.f32.mrf.mxu0
  %v595 = vadd.f32 0.0, %v594
  %596 = vmatmul.bf16.gmra.mxu0 %v325
  %v597 = vpop.f32.mrf.mxu0
  %v598 = vadd.f32 0.0, %v597
  %v599 = vpop.f32.mrf.mxu0
  %v600 = vadd.f32 0.0, %v599
  %601 = vmatmul.bf16.gmra.mxu0 %v327
  %v602 = vpop.f32.mrf.mxu0
  %v603 = vadd.f32 0.0, %v602
  %v604 = vpop.f32.mrf.mxu0
  %v605 = vadd.f32 0.0, %v604
  %606 = vmatmul.bf16.gmra.mxu0 %v329
  %v607 = vpop.f32.mrf.mxu0
  %v608 = vadd.f32 0.0, %v607
  %v609 = vpop.f32.mrf.mxu0
  %v610 = vadd.f32 0.0, %v609
  %611 = vmatmul.bf16.gmra.mxu0 %v331
  %v612 = vpop.f32.mrf.mxu0
  %v613 = vadd.f32 0.0, %v612
  %v614 = vpop.f32.mrf.mxu0
  %v615 = vadd.f32 0.0, %v614
  %616 = vmatmul.bf16.gmra.mxu0 %v333
  %v617 = vpop.f32.mrf.mxu0
  %v618 = vadd.f32 0.0, %v617
  %v619 = vpop.f32.mrf.mxu0
  %v620 = vadd.f32 0.0, %v619
  %621 = vmatmul.bf16.gmra.mxu0 %v335
  %v622 = vpop.f32.mrf.mxu0
  %v623 = vadd.f32 0.0, %v622
  %v624 = vpop.f32.mrf.mxu0
  %v625 = vadd.f32 0.0, %v624
  %626 = vmatmul.bf16.gmra.mxu0 %v337
  %v627 = vpop.f32.mrf.mxu0
  %v628 = vadd.f32 0.0, %v627
  %v629 = vpop.f32.mrf.mxu0
  %v630 = vadd.f32 0.0, %v629
  %631 = vmatmul.bf16.gmra.mxu0 %v339
  %v632 = vpop.f32.mrf.mxu0
  %v633 = vadd.f32 0.0, %v632
  %v634 = vpop.f32.mrf.mxu0
  %v635 = vadd.f32 0.0, %v634
  %636 = vmatmul.bf16.gmra.mxu0 %v341
  %v637 = vpop.f32.mrf.mxu0
  %v638 = vadd.f32 0.0, %v637
  %v639 = vpop.f32.mrf.mxu0
  %v640 = vadd.f32 0.0, %v639
  %641 = vmatmul.bf16.gmra.mxu0 %v343
  %v642 = vpop.f32.mrf.mxu0
  %v643 = vadd.f32 0.0, %v642
  %v644 = vpop.f32.mrf.mxu0
  %v645 = vadd.f32 0.0, %v644
  %646 = vmatmul.bf16.gmra.mxu0 %v345
  %v647 = vpop.f32.mrf.mxu0
  %v648 = vadd.f32 0.0, %v647
  %v649 = vpop.f32.mrf.mxu0
  %v650 = vadd.f32 0.0, %v649
  %651 = vmatmul.bf16.gmra.mxu0 %v347
  %v652 = vpop.f32.mrf.mxu0
  %v653 = vadd.f32 0.0, %v652
  %v654 = vpop.f32.mrf.mxu0
  %v655 = vadd.f32 0.0, %v654
  %656 = vmatmul.bf16.gmra.mxu0 %v349
  %v657 = vpop.f32.mrf.mxu0
  %v658 = vadd.f32 0.0, %v657
  %v659 = vpop.f32.mrf.mxu0
  %v660 = vadd.f32 0.0, %v659
  %661 = vmatmul.bf16.gmra.mxu0 %v351
  %v662 = vpop.f32.mrf.mxu0
  %v663 = vadd.f32 0.0, %v662
  %v664 = vpop.f32.mrf.mxu0
  %v665 = vadd.f32 0.0, %v664
  %666 = vmatmul.bf16.gmra.mxu0 %v353
  %v667 = vpop.f32.mrf.mxu0
  %v668 = vadd.f32 0.0, %v667
  %v669 = vpop.f32.mrf.mxu0
  %v670 = vadd.f32 0.0, %v669
  %671 = vmatmul.bf16.gmra.mxu0 %v355
  %v672 = vpop.f32.mrf.mxu0
  %v673 = vadd.f32 0.0, %v672
  %v674 = vpop.f32.mrf.mxu0
  %v675 = vadd.f32 0.0, %v674
  %676 = vmatmul.bf16.gmra.mxu0 %v357
  %v677 = vpop.f32.mrf.mxu0
  %v678 = vadd.f32 0.0, %v677
  %v679 = vpop.f32.mrf.mxu0
  %v680 = vadd.f32 0.0, %v679
  %681 = vmatmul.bf16.gmra.mxu0 %v359
  %v682 = vpop.f32.mrf.mxu0
  %v683 = vadd.f32 0.0, %v682
  %v684 = vpop.f32.mrf.mxu0
  %v685 = vadd.f32 0.0, %v684
  %686 = vmatmul.bf16.gmra.mxu0 %v361
  %v687 = vpop.f32.mrf.mxu0
  %v688 = vadd.f32 0.0, %v687
  %v689 = vpop.f32.mrf.mxu0
  %v690 = vadd.f32 0.0, %v689
  %691 = vdwg.mxu0
  %692 = vmatpush.bf16.msra.mxu0 %v506
  %693 = vmatpush.bf16.msra.mxu0 %v505
  %694 = vmatpush.bf16.msra.mxu0 %v504
  %695 = vmatpush.bf16.msra.mxu0 %v503
  %696 = vmatpush.bf16.msra.mxu0 %v502
  %697 = vmatpush.bf16.msra.mxu0 %v501
  %698 = vmatpush.bf16.msra.mxu0 %v500
  %699 = vmatpush.bf16.msra.mxu0 %v499
  %700 = vmatmul.bf16.gmra.mxu0 %v300
  %v701 = vpop.f32.mrf.mxu0
  %v702 = vadd.f32 %v533, %v701
  %v703 = vpop.f32.mrf.mxu0
  %v704 = vadd.f32 %v535, %v703
  %705 = vmatmul.bf16.gmra.mxu0 %v302
  %v706 = vpop.f32.mrf.mxu0
  %v707 = vadd.f32 %v538, %v706
  %v708 = vpop.f32.mrf.mxu0
  %v709 = vadd.f32 %v540, %v708
  %710 = vmatmul.bf16.gmra.mxu0 %v304
  %v711 = vpop.f32.mrf.mxu0
  %v712 = vadd.f32 %v543, %v711
  %v713 = vpop.f32.mrf.mxu0
  %v714 = vadd.f32 %v545, %v713
  %715 = vmatmul.bf16.gmra.mxu0 %v306
  %v716 = vpop.f32.mrf.mxu0
  %v717 = vadd.f32 %v548, %v716
  %v718 = vpop.f32.mrf.mxu0
  %v719 = vadd.f32 %v550, %v718
  %720 = vmatmul.bf16.gmra.mxu0 %v308
  %v721 = vpop.f32.mrf.mxu0
  %v722 = vadd.f32 %v553, %v721
  %v723 = vpop.f32.mrf.mxu0
  %v724 = vadd.f32 %v555, %v723
  %725 = vmatmul.bf16.gmra.mxu0 %v310
  %v726 = vpop.f32.mrf.mxu0
  %v727 = vadd.f32 %v558, %v726
  %v728 = vpop.f32.mrf.mxu0
  %v729 = vadd.f32 %v560, %v728
  %730 = vmatmul.bf16.gmra.mxu0 %v312
  %v731 = vpop.f32.mrf.mxu0
  %v732 = vadd.f32 %v563, %v731
  %v733 = vpop.f32.mrf.mxu0
  %v734 = vadd.f32 %v565, %v733
  %735 = vmatmul.bf16.gmra.mxu0 %v314
  %v736 = vpop.f32.mrf.mxu0
  %v737 = vadd.f32 %v568, %v736
  %v738 = vpop.f32.mrf.mxu0
  %v739 = vadd.f32 %v570, %v738
  %740 = vmatmul.bf16.gmra.mxu0 %v316
  %v741 = vpop.f32.mrf.mxu0
  %v742 = vadd.f32 %v573, %v741
  %v743 = vpop.f32.mrf.mxu0
  %v744 = vadd.f32 %v575, %v743
  %745 = vmatmul.bf16.gmra.mxu0 %v318
  %v746 = vpop.f32.mrf.mxu0
  %v747 = vadd.f32 %v578, %v746
  %v748 = vpop.f32.mrf.mxu0
  %v749 = vadd.f32 %v580, %v748
  %750 = vmatmul.bf16.gmra.mxu0 %v320
  %v751 = vpop.f32.mrf.mxu0
  %v752 = vadd.f32 %v583, %v751
  %v753 = vpop.f32.mrf.mxu0
  %v754 = vadd.f32 %v585, %v753
  %755 = vmatmul.bf16.gmra.mxu0 %v322
  %v756 = vpop.f32.mrf.mxu0
  %v757 = vadd.f32 %v588, %v756
  %v758 = vpop.f32.mrf.mxu0
  %v759 = vadd.f32 %v590, %v758
  %760 = vmatmul.bf16.gmra.mxu0 %v324
  %v761 = vpop.f32.mrf.mxu0
  %v762 = vadd.f32 %v593, %v761
  %v763 = vpop.f32.mrf.mxu0
  %v764 = vadd.f32 %v595, %v763
  %765 = vmatmul.bf16.gmra.mxu0 %v326
  %v766 = vpop.f32.mrf.mxu0
  %v767 = vadd.f32 %v598, %v766
  %v768 = vpop.f32.mrf.mxu0
  %v769 = vadd.f32 %v600, %v768
  %770 = vmatmul.bf16.gmra.mxu0 %v328
  %v771 = vpop.f32.mrf.mxu0
  %v772 = vadd.f32 %v603, %v771
  %v773 = vpop.f32.mrf.mxu0
  %v774 = vadd.f32 %v605, %v773
  %775 = vmatmul.bf16.gmra.mxu0 %v330
  %v776 = vpop.f32.mrf.mxu0
  %v777 = vadd.f32 %v608, %v776
  %v778 = vpop.f32.mrf.mxu0
  %v779 = vadd.f32 %v610, %v778
  %780 = vmatmul.bf16.gmra.mxu0 %v332
  %v781 = vpop.f32.mrf.mxu0
  %v782 = vadd.f32 %v613, %v781
  %v783 = vpop.f32.mrf.mxu0
  %v784 = vadd.f32 %v615, %v783
  %785 = vmatmul.bf16.gmra.mxu0 %v334
  %v786 = vpop.f32.mrf.mxu0
  %v787 = vadd.f32 %v618, %v786
  %v788 = vpop.f32.mrf.mxu0
  %v789 = vadd.f32 %v620, %v788
  %790 = vmatmul.bf16.gmra.mxu0 %v336
  %v791 = vpop.f32.mrf.mxu0
  %v792 = vadd.f32 %v623, %v791
  %v793 = vpop.f32.mrf.mxu0
  %v794 = vadd.f32 %v625, %v793
  %795 = vmatmul.bf16.gmra.mxu0 %v338
  %v796 = vpop.f32.mrf.mxu0
  %v797 = vadd.f32 %v628, %v796
  %v798 = vpop.f32.mrf.mxu0
  %v799 = vadd.f32 %v630, %v798
  %800 = vmatmul.bf16.gmra.mxu0 %v340
  %v801 = vpop.f32.mrf.mxu0
  %v802 = vadd.f32 %v633, %v801
  %v803 = vpop.f32.mrf.mxu0
  %v804 = vadd.f32 %v635, %v803
  %805 = vmatmul.bf16.gmra.mxu0 %v342
  %v806 = vpop.f32.mrf.mxu0
  %v807 = vadd.f32 %v638, %v806
  %v808 = vpop.f32.mrf.mxu0
  %v809 = vadd.f32 %v640, %v808
  %810 = vmatmul.bf16.gmra.mxu0 %v344
  %v811 = vpop.f32.mrf.mxu0
  %v812 = vadd.f32 %v643, %v811
  %v813 = vpop.f32.mrf.mxu0
  %v814 = vadd.f32 %v645, %v813
  %815 = vmatmul.bf16.gmra.mxu0 %v346
  %v816 = vpop.f32.mrf.mxu0
  %v817 = vadd.f32 %v648, %v816
  %v818 = vpop.f32.mrf.mxu0
  %v819 = vadd.f32 %v650, %v818
  %820 = vmatmul.bf16.gmra.mxu0 %v348
  %v821 = vpop.f32.mrf.mxu0
  %v822 = vadd.f32 %v653, %v821
  %v823 = vpop.f32.mrf.mxu0
  %v824 = vadd.f32 %v655, %v823
  %825 = vmatmul.bf16.gmra.mxu0 %v350
  %v826 = vpop.f32.mrf.mxu0
  %v827 = vadd.f32 %v658, %v826
  %v828 = vpop.f32.mrf.mxu0
  %v829 = vadd.f32 %v660, %v828
  %830 = vmatmul.bf16.gmra.mxu0 %v352
  %v831 = vpop.f32.mrf.mxu0
  %v832 = vadd.f32 %v663, %v831
  %v833 = vpop.f32.mrf.mxu0
  %v834 = vadd.f32 %v665, %v833
  %835 = vmatmul.bf16.gmra.mxu0 %v354
  %v836 = vpop.f32.mrf.mxu0
  %v837 = vadd.f32 %v668, %v836
  %v838 = vpop.f32.mrf.mxu0
  %v839 = vadd.f32 %v670, %v838
  %840 = vmatmul.bf16.gmra.mxu0 %v356
  %v841 = vpop.f32.mrf.mxu0
  %v842 = vadd.f32 %v673, %v841
  %v843 = vpop.f32.mrf.mxu0
  %v844 = vadd.f32 %v675, %v843
  %845 = vmatmul.bf16.gmra.mxu0 %v358
  %v846 = vpop.f32.mrf.mxu0
  %v847 = vadd.f32 %v678, %v846
  %v848 = vpop.f32.mrf.mxu0
  %v849 = vadd.f32 %v680, %v848
  %850 = vmatmul.bf16.gmra.mxu0 %v360
  %v851 = vpop.f32.mrf.mxu0
  %v852 = vadd.f32 %v683, %v851
  %v853 = vpop.f32.mrf.mxu0
  %v854 = vadd.f32 %v685, %v853
  %855 = vmatmul.bf16.gmra.mxu0 %v362
  %v856 = vpop.f32.mrf.mxu0
  %v857 = vadd.f32 %v688, %v856
  %v858 = vpop.f32.mrf.mxu0
  %v859 = vadd.f32 %v690, %v858
  %860 = vdwg.mxu0
  %vm861 = vcmp.gt.f32.partialorder %v702, 0.0
  %vm862 = vcmp.gt.f32.partialorder %v704, 0.0
  %vm863 = vcmp.gt.f32.partialorder %v707, 0.0
  %vm864 = vcmp.gt.f32.partialorder %v709, 0.0
  %vm865 = vcmp.gt.f32.partialorder %v712, 0.0
  %vm866 = vcmp.gt.f32.partialorder %v714, 0.0
  %vm867 = vcmp.gt.f32.partialorder %v717, 0.0
  %vm868 = vcmp.gt.f32.partialorder %v719, 0.0
  %vm869 = vcmp.gt.f32.partialorder %v722, 0.0
  %vm870 = vcmp.gt.f32.partialorder %v724, 0.0
  %vm871 = vcmp.gt.f32.partialorder %v727, 0.0
  %vm872 = vcmp.gt.f32.partialorder %v729, 0.0
  %vm873 = vcmp.gt.f32.partialorder %v732, 0.0
  %vm874 = vcmp.gt.f32.partialorder %v734, 0.0
  %vm875 = vcmp.gt.f32.partialorder %v737, 0.0
  %vm876 = vcmp.gt.f32.partialorder %v739, 0.0
  %vm877 = vcmp.gt.f32.partialorder %v742, 0.0
  %vm878 = vcmp.gt.f32.partialorder %v744, 0.0
  %vm879 = vcmp.gt.f32.partialorder %v747, 0.0
  %vm880 = vcmp.gt.f32.partialorder %v749, 0.0
  %vm881 = vcmp.gt.f32.partialorder %v752, 0.0
  %vm882 = vcmp.gt.f32.partialorder %v754, 0.0
  %vm883 = vcmp.gt.f32.partialorder %v757, 0.0
  %vm884 = vcmp.gt.f32.partialorder %v759, 0.0
  %vm885 = vcmp.gt.f32.partialorder %v762, 0.0
  %vm886 = vcmp.gt.f32.partialorder %v764, 0.0
  %vm887 = vcmp.gt.f32.partialorder %v767, 0.0
  %vm888 = vcmp.gt.f32.partialorder %v769, 0.0
  %vm889 = vcmp.gt.f32.partialorder %v772, 0.0
  %vm890 = vcmp.gt.f32.partialorder %v774, 0.0
  %vm891 = vcmp.gt.f32.partialorder %v777, 0.0
  %vm892 = vcmp.gt.f32.partialorder %v779, 0.0
  %vm893 = vcmp.gt.f32.partialorder %v782, 0.0
  %vm894 = vcmp.gt.f32.partialorder %v784, 0.0
  %vm895 = vcmp.gt.f32.partialorder %v787, 0.0
  %vm896 = vcmp.gt.f32.partialorder %v789, 0.0
  %vm897 = vcmp.gt.f32.partialorder %v792, 0.0
  %vm898 = vcmp.gt.f32.partialorder %v794, 0.0
  %vm899 = vcmp.gt.f32.partialorder %v797, 0.0
  %vm900 = vcmp.gt.f32.partialorder %v799, 0.0
  %vm901 = vcmp.gt.f32.partialorder %v802, 0.0
  %vm902 = vcmp.gt.f32.partialorder %v804, 0.0
  %vm903 = vcmp.gt.f32.partialorder %v807, 0.0
  %vm904 = vcmp.gt.f32.partialorder %v809, 0.0
  %vm905 = vcmp.gt.f32.partialorder %v812, 0.0
  %vm906 = vcmp.gt.f32.partialorder %v814, 0.0
  %vm907 = vcmp.gt.f32.partialorder %v817, 0.0
  %vm908 = vcmp.gt.f32.partialorder %v819, 0.0
  %vm909 = vcmp.gt.f32.partialorder %v822, 0.0
  %vm910 = vcmp.gt.f32.partialorder %v824, 0.0
  %vm911 = vcmp.gt.f32.partialorder %v827, 0.0
  %vm912 = vcmp.gt.f32.partialorder %v829, 0.0
  %vm913 = vcmp.gt.f32.partialorder %v832, 0.0
  %vm914 = vcmp.gt.f32.partialorder %v834, 0.0
  %vm915 = vcmp.gt.f32.partialorder %v837, 0.0
  %vm916 = vcmp.gt.f32.partialorder %v839, 0.0
  %vm917 = vcmp.gt.f32.partialorder %v842, 0.0
  %vm918 = vcmp.gt.f32.partialorder %v844, 0.0
  %vm919 = vcmp.gt.f32.partialorder %v847, 0.0
  %vm920 = vcmp.gt.f32.partialorder %v849, 0.0
  %vm921 = vcmp.gt.f32.partialorder %v852, 0.0
  %vm922 = vcmp.gt.f32.partialorder %v854, 0.0
  %vm923 = vcmp.gt.f32.partialorder %v857, 0.0
  %vm924 = vcmp.gt.f32.partialorder %v859, 0.0
  %v925 = vmul.f32 %v702, 0.2
  %v926 = vmul.f32 %v704, 0.2
  %v927 = vmul.f32 %v707, 0.2
  %v928 = vmul.f32 %v709, 0.2
  %v929 = vmul.f32 %v712, 0.2
  %v930 = vmul.f32 %v714, 0.2
  %v931 = vmul.f32 %v717, 0.2
  %v932 = vmul.f32 %v719, 0.2
  %v933 = vmul.f32 %v722, 0.2
  %v934 = vmul.f32 %v724, 0.2
  %v935 = vmul.f32 %v727, 0.2
  %v936 = vmul.f32 %v729, 0.2
  %v937 = vmul.f32 %v732, 0.2
  %v938 = vmul.f32 %v734, 0.2
  %v939 = vmul.f32 %v737, 0.2
  %v940 = vmul.f32 %v739, 0.2
  %v941 = vmul.f32 %v742, 0.2
  %v942 = vmul.f32 %v744, 0.2
  %v943 = vmul.f32 %v747, 0.2
  %v944 = vmul.f32 %v749, 0.2
  %v945 = vmul.f32 %v752, 0.2
  %v946 = vmul.f32 %v754, 0.2
  %v947 = vmul.f32 %v757, 0.2
  %v948 = vmul.f32 %v759, 0.2
  %v949 = vmul.f32 %v762, 0.2
  %v950 = vmul.f32 %v764, 0.2
  %v951 = vmul.f32 %v767, 0.2
  %v952 = vmul.f32 %v769, 0.2
  %v953 = vmul.f32 %v772, 0.2
  %v954 = vmul.f32 %v774, 0.2
  %v955 = vmul.f32 %v777, 0.2
  %v956 = vmul.f32 %v779, 0.2
  %v957 = vmul.f32 %v782, 0.2
  %v958 = vmul.f32 %v784, 0.2
  %v959 = vmul.f32 %v787, 0.2
  %v960 = vmul.f32 %v789, 0.2
  %v961 = vmul.f32 %v792, 0.2
  %v962 = vmul.f32 %v794, 0.2
  %v963 = vmul.f32 %v797, 0.2
  %v964 = vmul.f32 %v799, 0.2
  %v965 = vmul.f32 %v802, 0.2
  %v966 = vmul.f32 %v804, 0.2
  %v967 = vmul.f32 %v807, 0.2
  %v968 = vmul.f32 %v809, 0.2
  %v969 = vmul.f32 %v812, 0.2
  %v970 = vmul.f32 %v814, 0.2
  %v971 = vmul.f32 %v817, 0.2
  %v972 = vmul.f32 %v819, 0.2
  %v973 = vmul.f32 %v822, 0.2
  %v974 = vmul.f32 %v824, 0.2
  %v975 = vmul.f32 %v827, 0.2
  %v976 = vmul.f32 %v829, 0.2
  %v977 = vmul.f32 %v832, 0.2
  %v978 = vmul.f32 %v834, 0.2
  %v979 = vmul.f32 %v837, 0.2
  %v980 = vmul.f32 %v839, 0.2
  %v981 = vmul.f32 %v842, 0.2
  %v982 = vmul.f32 %v844, 0.2
  %v983 = vmul.f32 %v847, 0.2
  %v984 = vmul.f32 %v849, 0.2
  %v985 = vmul.f32 %v852, 0.2
  %v986 = vmul.f32 %v854, 0.2
  %v987 = vmul.f32 %v857, 0.2
  %v988 = vmul.f32 %v859, 0.2
  %v989 = vsel %vm861, %v702, %v925
  %v990 = vsel %vm862, %v704, %v926
  %v991 = vsel %vm863, %v707, %v927
  %v992 = vsel %vm864, %v709, %v928
  %v993 = vsel %vm865, %v712, %v929
  %v994 = vsel %vm866, %v714, %v930
  %v995 = vsel %vm867, %v717, %v931
  %v996 = vsel %vm868, %v719, %v932
  %v997 = vsel %vm869, %v722, %v933
  %v998 = vsel %vm870, %v724, %v934
  %v999 = vsel %vm871, %v727, %v935
  %v1000 = vsel %vm872, %v729, %v936
  %v1001 = vsel %vm873, %v732, %v937
  %v1002 = vsel %vm874, %v734, %v938
  %v1003 = vsel %vm875, %v737, %v939
  %v1004 = vsel %vm876, %v739, %v940
  %v1005 = vsel %vm877, %v742, %v941
  %v1006 = vsel %vm878, %v744, %v942
  %v1007 = vsel %vm879, %v747, %v943
  %v1008 = vsel %vm880, %v749, %v944
  %v1009 = vsel %vm881, %v752, %v945
  %v1010 = vsel %vm882, %v754, %v946
  %v1011 = vsel %vm883, %v757, %v947
  %v1012 = vsel %vm884, %v759, %v948
  %v1013 = vsel %vm885, %v762, %v949
  %v1014 = vsel %vm886, %v764, %v950
  %v1015 = vsel %vm887, %v767, %v951
  %v1016 = vsel %vm888, %v769, %v952
  %v1017 = vsel %vm889, %v772, %v953
  %v1018 = vsel %vm890, %v774, %v954
  %v1019 = vsel %vm891, %v777, %v955
  %v1020 = vsel %vm892, %v779, %v956
  %v1021 = vsel %vm893, %v782, %v957
  %v1022 = vsel %vm894, %v784, %v958
  %v1023 = vsel %vm895, %v787, %v959
  %v1024 = vsel %vm896, %v789, %v960
  %v1025 = vsel %vm897, %v792, %v961
  %v1026 = vsel %vm898, %v794, %v962
  %v1027 = vsel %vm899, %v797, %v963
  %v1028 = vsel %vm900, %v799, %v964
  %v1029 = vsel %vm901, %v802, %v965
  %v1030 = vsel %vm902, %v804, %v966
  %v1031 = vsel %vm903, %v807, %v967
  %v1032 = vsel %vm904, %v809, %v968
  %v1033 = vsel %vm905, %v812, %v969
  %v1034 = vsel %vm906, %v814, %v970
  %v1035 = vsel %vm907, %v817, %v971
  %v1036 = vsel %vm908, %v819, %v972
  %v1037 = vsel %vm909, %v822, %v973
  %v1038 = vsel %vm910, %v824, %v974
  %v1039 = vsel %vm911, %v827, %v975
  %v1040 = vsel %vm912, %v829, %v976
  %v1041 = vsel %vm913, %v832, %v977
  %v1042 = vsel %vm914, %v834, %v978
  %v1043 = vsel %vm915, %v837, %v979
  %v1044 = vsel %vm916, %v839, %v980
  %v1045 = vsel %vm917, %v842, %v981
  %v1046 = vsel %vm918, %v844, %v982
  %v1047 = vsel %vm919, %v847, %v983
  %v1048 = vsel %vm920, %v849, %v984
  %v1049 = vsel %vm921, %v852, %v985
  %v1050 = vsel %vm922, %v854, %v986
  %v1051 = vsel %vm923, %v857, %v987
  %v1052 = vsel %vm924, %v859, %v988
  %v1053 = vpack.c.bf16 %v989, %v989
  %v1054 = vpack.c.bf16 %v990, %v990
  %v1055 = vpack.c.bf16 %v991, %v991
  %v1056 = vpack.c.bf16 %v992, %v992
  %v1057 = vpack.c.bf16 %v993, %v993
  %v1058 = vpack.c.bf16 %v994, %v994
  %v1059 = vpack.c.bf16 %v995, %v995
  %v1060 = vpack.c.bf16 %v996, %v996
  %v1061 = vpack.c.bf16 %v997, %v997
  %v1062 = vpack.c.bf16 %v998, %v998
  %v1063 = vpack.c.bf16 %v999, %v999
  %v1064 = vpack.c.bf16 %v1000, %v1000
  %v1065 = vpack.c.bf16 %v1001, %v1001
  %v1066 = vpack.c.bf16 %v1002, %v1002
  %v1067 = vpack.c.bf16 %v1003, %v1003
  %v1068 = vpack.c.bf16 %v1004, %v1004
  %v1069 = vpack.c.bf16 %v1005, %v1005
  %v1070 = vpack.c.bf16 %v1006, %v1006
  %v1071 = vpack.c.bf16 %v1007, %v1007
  %v1072 = vpack.c.bf16 %v1008, %v1008
  %v1073 = vpack.c.bf16 %v1009, %v1009
  %v1074 = vpack.c.bf16 %v1010, %v1010
  %v1075 = vpack.c.bf16 %v1011, %v1011
  %v1076 = vpack.c.bf16 %v1012, %v1012
  %v1077 = vpack.c.bf16 %v1013, %v1013
  %v1078 = vpack.c.bf16 %v1014, %v1014
  %v1079 = vpack.c.bf16 %v1015, %v1015
  %v1080 = vpack.c.bf16 %v1016, %v1016
  %v1081 = vpack.c.bf16 %v1017, %v1017
  %v1082 = vpack.c.bf16 %v1018, %v1018
  %v1083 = vpack.c.bf16 %v1019, %v1019
  %v1084 = vpack.c.bf16 %v1020, %v1020
  %v1085 = vpack.c.bf16 %v1021, %v1021
  %v1086 = vpack.c.bf16 %v1022, %v1022
  %v1087 = vpack.c.bf16 %v1023, %v1023
  %v1088 = vpack.c.bf16 %v1024, %v1024
  %v1089 = vpack.c.bf16 %v1025, %v1025
  %v1090 = vpack.c.bf16 %v1026, %v1026
  %v1091 = vpack.c.bf16 %v1027, %v1027
  %v1092 = vpack.c.bf16 %v1028, %v1028
  %v1093 = vpack.c.bf16 %v1029, %v1029
  %v1094 = vpack.c.bf16 %v1030, %v1030
  %v1095 = vpack.c.bf16 %v1031, %v1031
  %v1096 = vpack.c.bf16 %v1032, %v1032
  %v1097 = vpack.c.bf16 %v1033, %v1033
  %v1098 = vpack.c.bf16 %v1034, %v1034
  %v1099 = vpack.c.bf16 %v1035, %v1035
  %v1100 = vpack.c.bf16 %v1036, %v1036
  %v1101 = vpack.c.bf16 %v1037, %v1037
  %v1102 = vpack.c.bf16 %v1038, %v1038
  %v1103 = vpack.c.bf16 %v1039, %v1039
  %v1104 = vpack.c.bf16 %v1040, %v1040
  %v1105 = vpack.c.bf16 %v1041, %v1041
  %v1106 = vpack.c.bf16 %v1042, %v1042
  %v1107 = vpack.c.bf16 %v1043, %v1043
  %v1108 = vpack.c.bf16 %v1044, %v1044
  %v1109 = vpack.c.bf16 %v1045, %v1045
  %v1110 = vpack.c.bf16 %v1046, %v1046
  %v1111 = vpack.c.bf16 %v1047, %v1047
  %v1112 = vpack.c.bf16 %v1048, %v1048
  %v1113 = vpack.c.bf16 %v1049, %v1049
  %v1114 = vpack.c.bf16 %v1050, %v1050
  %v1115 = vpack.c.bf16 %v1051, %v1051
  %v1116 = vpack.c.bf16 %v1052, %v1052
  %1117 = vst [vmem:[%s2] sm:$0xf] %v1053
  %1118 = vst [vmem:[%s2 + $0x4] sm:$0xf] %v1054
  %1119 = vst [vmem:[%s2 + $0x8] sm:$0xf] %v1055
  %1120 = vst [vmem:[%s2 + $0xc] sm:$0xf] %v1056
  %1121 = vst [vmem:[%s2 + $0x10] sm:$0xf] %v1057
  %1122 = vst [vmem:[%s2 + $0x14] sm:$0xf] %v1058
  %1123 = vst [vmem:[%s2 + $0x18] sm:$0xf] %v1059
  %1124 = vst [vmem:[%s2 + $0x1c] sm:$0xf] %v1060
  %1125 = vst [vmem:[%s2 + $0x20] sm:$0xf] %v1061
  %1126 = vst [vmem:[%s2 + $0x24] sm:$0xf] %v1062
  %1127 = vst [vmem:[%s2 + $0x28] sm:$0xf] %v1063
  %1128 = vst [vmem:[%s2 + $0x2c] sm:$0xf] %v1064
  %1129 = vst [vmem:[%s2 + $0x30] sm:$0xf] %v1065
  %1130 = vst [vmem:[%s2 + $0x34] sm:$0xf] %v1066
  %1131 = vst [vmem:[%s2 + $0x38] sm:$0xf] %v1067
  %1132 = vst [vmem:[%s2 + $0x3c] sm:$0xf] %v1068
  %1133 = vst [vmem:[%s2 + $0x40] sm:$0xf] %v1069
  %1134 = vst [vmem:[%s2 + $0x44] sm:$0xf] %v1070
  %1135 = vst [vmem:[%s2 + $0x48] sm:$0xf] %v1071
  %1136 = vst [vmem:[%s2 + $0x4c] sm:$0xf] %v1072
  %1137 = vst [vmem:[%s2 + $0x50] sm:$0xf] %v1073
  %1138 = vst [vmem:[%s2 + $0x54] sm:$0xf] %v1074
  %1139 = vst [vmem:[%s2 + $0x58] sm:$0xf] %v1075
  %1140 = vst [vmem:[%s2 + $0x5c] sm:$0xf] %v1076
  %1141 = vst [vmem:[%s2 + $0x60] sm:$0xf] %v1077
  %1142 = vst [vmem:[%s2 + $0x64] sm:$0xf] %v1078
  %1143 = vst [vmem:[%s2 + $0x68] sm:$0xf] %v1079
  %1144 = vst [vmem:[%s2 + $0x6c] sm:$0xf] %v1080
  %1145 = vst [vmem:[%s2 + $0x70] sm:$0xf] %v1081
  %1146 = vst [vmem:[%s2 + $0x74] sm:$0xf] %v1082
  %1147 = vst [vmem:[%s2 + $0x78] sm:$0xf] %v1083
  %1148 = vst [vmem:[%s2 + $0x7c] sm:$0xf] %v1084
  %1149 = vst [vmem:[%s2 + $0x80] sm:$0xf] %v1085
  %1150 = vst [vmem:[%s2 + $0x84] sm:$0xf] %v1086
  %1151 = vst [vmem:[%s2 + $0x88] sm:$0xf] %v1087
  %1152 = vst [vmem:[%s2 + $0x8c] sm:$0xf] %v1088
  %1153 = vst [vmem:[%s2 + $0x90] sm:$0xf] %v1089
  %1154 = vst [vmem:[%s2 + $0x94] sm:$0xf] %v1090
  %1155 = vst [vmem:[%s2 + $0x98] sm:$0xf] %v1091
  %1156 = vst [vmem:[%s2 + $0x9c] sm:$0xf] %v1092
  %1157 = vst [vmem:[%s2 + $0xa0] sm:$0xf] %v1093
  %1158 = vst [vmem:[%s2 + $0xa4] sm:$0xf] %v1094
  %1159 = vst [vmem:[%s2 + $0xa8] sm:$0xf] %v1095
  %1160 = vst [vmem:[%s2 + $0xac] sm:$0xf] %v1096
  %1161 = vst [vmem:[%s2 + $0xb0] sm:$0xf] %v1097
  %1162 = vst [vmem:[%s2 + $0xb4] sm:$0xf] %v1098
  %1163 = vst [vmem:[%s2 + $0xb8] sm:$0xf] %v1099
  %1164 = vst [vmem:[%s2 + $0xbc] sm:$0xf] %v1100
  %1165 = vst [vmem:[%s2 + $0xc0] sm:$0xf] %v1101
  %1166 = vst [vmem:[%s2 + $0xc4] sm:$0xf] %v1102
  %1167 = vst [vmem:[%s2 + $0xc8] sm:$0xf] %v1103
  %1168 = vst [vmem:[%s2 + $0xcc] sm:$0xf] %v1104
  %1169 = vst [vmem:[%s2 + $0xd0] sm:$0xf] %v1105
  %1170 = vst [vmem:[%s2 + $0xd4] sm:$0xf] %v1106
  %1171 = vst [vmem:[%s2 + $0xd8] sm:$0xf] %v1107
  %1172 = vst [vmem:[%s2 + $0xdc] sm:$0xf] %v1108
  %1173 = vst [vmem:[%s2 + $0xe0] sm:$0xf] %v1109
  %1174 = vst [vmem:[%s2 + $0xe4] sm:$0xf] %v1110
  %1175 = vst [vmem:[%s2 + $0xe8] sm:$0xf] %v1111
  %1176 = vst [vmem:[%s2 + $0xec] sm:$0xf] %v1112
  %1177 = vst [vmem:[%s2 + $0xf0] sm:$0xf] %v1113
  %1178 = vst [vmem:[%s2 + $0xf4] sm:$0xf] %v1114
  %1179 = vst [vmem:[%s2 + $0xf8] sm:$0xf] %v1115
  %1180 = vst [vmem:[%s2 + $0xfc] sm:$0xf] %v1116
  // Predicated region
  $region10: #{_conv_act_layer.1} parent=0 // pred_check
    _
  $region11: #{_conv_act_layer.1} parent=0 // pred_check_branch
    %1182 = sbr.rel (0) target = $region13
  $region12: #{_conv_act_layer.1} parent=0 // pred_region
    _
  $region13: #{_conv_act_layer.1} parent=0 // pred_fallthru
    _
  // Predicated region
  $region14: #{_conv_act_layer.1} parent=0 // pred_check
    _
  $region15: #{_conv_act_layer.1} parent=0 // pred_check_branch
    %1184 = sbr.rel (0) target = $region17
  $region16: #{_conv_act_layer.1} parent=0 // pred_region
    _
  $region17: #{_conv_act_layer.1} parent=0 // pred_fallthru
    _

</llo_original>
